<compile_context>
chip_gen: v5e
topology: v5e:2x2
jax: 0.10.0
libtpu: 0.0.40
codegen_flags: <defaults>
</compile_context>

<pallas_src>
import jax
import jax.numpy as jnp
from jax.experimental import pallas as pl
from jax.experimental.pallas import tpu as pltpu


def _make_ca_kernel(hw: int, hw_tile: int, need_mask: bool):
    inv_hw = 1.0 / float(hw)

    def _ca_kernel(x_ref, w1t_ref, b1_ref, w2t_ref, b2_ref,
                   feats_ref, reg_ref, acc_ref):
        # x_ref: (1, C, hw_tile) in the input dtype
        s = pl.program_id(1)

        @pl.when(s == 0)
        def _():
            acc_ref[...] = jnp.zeros_like(acc_ref)

        tile = x_ref[...].astype(jnp.float32)               # upcast, f32 accumulate
        if need_mask:
            # Last spatial tile may hang past H*W: zero the out-of-range lanes.
            lane = jax.lax.broadcasted_iota(jnp.int32, tile.shape, dimension=2)
            tile = jnp.where(lane + s * hw_tile < hw, tile, 0.0)
        acc_ref[...] += jnp.sum(tile, axis=-1)               # (1, C) raw sums

        @pl.when(s == pl.num_programs(1) - 1)
        def _():
            pooled = acc_ref[...] * inv_hw                   # adaptive_avg_pool2d((1,1))

            # linear_1: C -> C//4, ReLU
            h1 = jnp.dot(pooled, w1t_ref[...],
                         preferred_element_type=jnp.float32) + b1_ref[...]
            h1 = jnp.maximum(h1, 0.0)

            # linear_2: C//4 -> C, sigmoid (exp runs on the EUP slot)
            h2 = jnp.dot(h1, w2t_ref[...],
                         preferred_element_type=jnp.float32) + b2_ref[...]
            feats = 1.0 / (1.0 + jnp.exp(-h2))               # (1, C)

            feats_ref[...] = feats[:, None, :]               # (1, 1, C)
            reg_ref[...] = jnp.sum(feats, axis=(0, 1),
                                   keepdims=True).reshape(1, 1, 1)

    return _ca_kernel


def channelwise_attention(x, w1, b1, w2, b2):
    """x: (B, C, H, W). Returns (feats_expanded (B,C,H,W), ca_act_reg scalar)."""
    B, C, H, W = x.shape
    hw = H * W
    hidden = w1.shape[0]                                     # C // 4

    # Keep the input dtype (bf16 upstream stays bf16 -> half the HBM read).
    x_flat = x.reshape(B, C, hw)

    # Pre-transpose weights so the kernel does plain row-major matmuls.
    w1t = jnp.asarray(w1, jnp.float32).T                     # (C, C//4)
    w2t = jnp.asarray(w2, jnp.float32).T                     # (C//4, C)
    b1_2d = jnp.asarray(b1, jnp.float32).reshape(1, hidden)  # (1, C//4)
    b2_2d = jnp.asarray(b2, jnp.float32).reshape(1, C)       # (1, C)

    # --- spatial tile sizing: multiple of 128 lanes, capped by a VMEM budget ---
    b_tile = 1
    itemsize = x_flat.dtype.itemsize
    budget_bytes = 6 * 1024 * 1024                           # per x buffer (x2 for double-buffer)
    max_lanes = max(128, budget_bytes // max(1, b_tile * C * itemsize))
    target = max(128, (min(2048, max_lanes) // 128) * 128)
    if hw <= target:
        hw_tile = hw                                         # full-extent block is always legal
        need_mask = False
    else:
        hw_tile = target
        need_mask = (hw % hw_tile) != 0
    num_s = pl.cdiv(hw, hw_tile)
    num_b = B // b_tile

    kernel = _make_ca_kernel(hw, hw_tile, need_mask)

    cost = pl.CostEstimate(
        flops=B * C * hw + 2 * 2 * B * C * hidden,
        transcendentals=B * C,
        bytes_accessed=B * C * hw * itemsize + (B * C + B) * 4,
    )

    feats3, reg_part = pl.pallas_call(
        kernel,
        out_shape=(
            jax.ShapeDtypeStruct((B, 1, C), jnp.float32),
            jax.ShapeDtypeStruct((num_b, 1, 1), jnp.float32),
        ),
        grid=(num_b, num_s),                                  # reduction axis last
        in_specs=[
            pl.BlockSpec((b_tile, C, hw_tile), lambda bi, s: (bi, 0, s)),
            pl.BlockSpec((C, hidden), lambda bi, s: (0, 0)),  # weights resident in VMEM
            pl.BlockSpec((1, hidden), lambda bi, s: (0, 0)),
            pl.BlockSpec((hidden, C), lambda bi, s: (0, 0)),
            pl.BlockSpec((1, C), lambda bi, s: (0, 0)),
        ],
        out_specs=(
            pl.BlockSpec((b_tile, 1, C), lambda bi, s: (bi, 0, 0)),
            pl.BlockSpec((1, 1, 1), lambda bi, s: (bi, 0, 0)),
        ),
        scratch_shapes=[pltpu.VMEM((b_tile, C), jnp.float32)],  # pooled-sum accumulator
        compiler_params=pltpu.CompilerParams(
            dimension_semantics=("parallel", "arbitrary"),
            vmem_limit_bytes=32 * 1024 * 1024,
        ),
        cost_estimate=cost,
    )(x_flat, w1t, b1_2d, w2t, b2_2d)

    feats = feats3[:, 0, :]                                   # (B, C)
    ca_act_reg = jnp.sum(reg_part) / (B * C)

    # expand_as: broadcast (B, C) -> (B, C, H, W). Pure glue — prefer consuming the
    # (B, C) feats directly so XLA fuses the broadcast into the consumer's multiply.
    feats_expanded = jnp.broadcast_to(feats[:, :, None, None],
                                      (B, C, H, W)).astype(x.dtype)
    return feats_expanded, ca_act_reg


def _reference(x, w1, b1, w2, b2):
    pooled = jnp.mean(x.astype(jnp.float32), axis=(2, 3))
    h1 = jax.nn.relu(pooled @ w1.T + b1)
    h2 = jax.nn.sigmoid(h1 @ w2.T + b2)
    reg = jnp.mean(h2)
    return jnp.broadcast_to(h2[:, :, None, None], x.shape), reg


if __name__ == "__main__":
    B, C, H, W = 2, 4, 16, 16
    key = jax.random.PRNGKey(0)
    kx, k1w, k1b, k2w, k2b = jax.random.split(key, 5)

    x = jax.random.normal(kx, (B, C, H, W), dtype=jnp.float32)

    # nn.Linear(in_channels, in_channels // 4) and nn.Linear(in_channels // 4, in_channels)
    # PyTorch-style deterministic init: uniform(-1/sqrt(fan_in), 1/sqrt(fan_in)).
    hid = C // 4
    lim1 = 1.0 / jnp.sqrt(jnp.float32(C))
    lim2 = 1.0 / jnp.sqrt(jnp.float32(hid))
    w1 = jax.random.uniform(k1w, (hid, C), jnp.float32, -lim1, lim1)   # (C//4, C)
    b1 = jax.random.uniform(k1b, (hid,), jnp.float32, -lim1, lim1)
    w2 = jax.random.uniform(k2w, (C, hid), jnp.float32, -lim2, lim2)   # (C, C//4)
    b2 = jax.random.uniform(k2b, (C,), jnp.float32, -lim2, lim2)

    feats, ca_act_reg = channelwise_attention(x, w1, b1, w2, b2)
    jax.block_until_ready(feats)
    jax.block_until_ready(ca_act_reg)

    ref_feats, ref_reg = _reference(x, w1, b1, w2, b2)
    assert feats.shape == (B, C, H, W)
    assert jnp.allclose(feats, ref_feats, atol=1e-5, rtol=1e-5)
    assert jnp.allclose(ca_act_reg, ref_reg, atol=1e-5, rtol=1e-5)

    print("KERNEL_OK")
</pallas_src>

<mosaic_0001>
module attributes {stable_mosaic.version = 11 : i64} {
  func.func @_ca_kernel(%arg0: i32, %arg1: i32, %arg2: memref<1x4x256xf32, #tpu.memory_space<vmem>>, %arg3: memref<4x1xf32, #tpu.memory_space<vmem>>, %arg4: memref<1x1xf32, #tpu.memory_space<vmem>>, %arg5: memref<1x4xf32, #tpu.memory_space<vmem>>, %arg6: memref<1x4xf32, #tpu.memory_space<vmem>>, %arg7: memref<1x1x4xf32, #tpu.memory_space<vmem>>, %arg8: memref<1x1x1xf32, #tpu.memory_space<vmem>>, %arg9: memref<1x4xf32, #tpu.memory_space<vmem>>) attributes {dimension_semantics = [#tpu.dimension_semantics<parallel>, #tpu.dimension_semantics<arbitrary>], iteration_bounds = array<i64: 2, 1>, scalar_prefetch = 0 : i64, scratch_operands = 1 : i64, tpu.core_type = #tpu.core_type<tc>, window_params = [{transform_indices = @transform_0, window_bounds = array<i64: 1, 4, 256>}, {pipeline_mode = #tpu.pipeline_mode<synchronous>, transform_indices = @transform_1, window_bounds = array<i64: 4, 1>}, {pipeline_mode = #tpu.pipeline_mode<synchronous>, transform_indices = @transform_2, window_bounds = array<i64: 1, 1>}, {pipeline_mode = #tpu.pipeline_mode<synchronous>, transform_indices = @transform_3, window_bounds = array<i64: 1, 4>}, {pipeline_mode = #tpu.pipeline_mode<synchronous>, transform_indices = @transform_4, window_bounds = array<i64: 1, 4>}, {transform_indices = @transform_5, window_bounds = array<i64: 1, 1, 4>}, {transform_indices = @transform_6, window_bounds = array<i64: 1, 1, 1>}]} {
    %c0_i32 = arith.constant 0 : i32
    %0 = arith.cmpi eq, %arg1, %c0_i32 : i32
    %1 = arith.extui %0 : i1 to i32
    %c0_i32_0 = arith.constant 0 : i32
    %2 = arith.cmpi ne, %1, %c0_i32_0 : i32
    scf.if %2 {
      %cst_9 = arith.constant 0.000000e+00 : f32
      %11 = vector.broadcast %cst_9 : f32 to vector<1x4xf32>
      %c0_10 = arith.constant 0 : index
      %c0_11 = arith.constant 0 : index
      %12 = vector.load %arg9[%c0_10, %c0_11] : memref<1x4xf32, #tpu.memory_space<vmem>>, vector<1x4xf32>
      tpu.vector_store %arg9[%c0_10, %c0_11], %11 {strides = array<i32>} : memref<1x4xf32, #tpu.memory_space<vmem>>, vector<1x4xf32>,
    } else {
    }
    %c0 = arith.constant 0 : index
    %c0_1 = arith.constant 0 : index
    %c0_2 = arith.constant 0 : index
    %3 = vector.load %arg2[%c0, %c0_1, %c0_2] : memref<1x4x256xf32, #tpu.memory_space<vmem>>, vector<1x4x256xf32>
    %c0_3 = arith.constant 0 : index
    %c0_4 = arith.constant 0 : index
    %4 = vector.load %arg9[%c0_3, %c0_4] : memref<1x4xf32, #tpu.memory_space<vmem>>, vector<1x4xf32>
    %cst = arith.constant dense<0.000000e+00> : vector<1x4xf32>
    %5 = vector.multi_reduction <add>, %3, %cst [2] : vector<1x4x256xf32> to vector<1x4xf32>
    %6 = arith.addf %4, %5 : vector<1x4xf32>
    %c0_5 = arith.constant 0 : index
    %c0_6 = arith.constant 0 : index
    %7 = vector.load %arg9[%c0_5, %c0_6] : memref<1x4xf32, #tpu.memory_space<vmem>>, vector<1x4xf32>
    tpu.vector_store %arg9[%c0_5, %c0_6], %6 {strides = array<i32>} : memref<1x4xf32, #tpu.memory_space<vmem>>, vector<1x4xf32>,
    %c0_i32_7 = arith.constant 0 : i32
    %8 = arith.cmpi eq, %arg1, %c0_i32_7 : i32
    %9 = arith.extui %8 : i1 to i32
    %c0_i32_8 = arith.constant 0 : i32
    %10 = arith.cmpi ne, %9, %c0_i32_8 : i32
    scf.if %10 {
      %c0_9 = arith.constant 0 : index
      %c0_10 = arith.constant 0 : index
      %11 = vector.load %arg9[%c0_9, %c0_10] : memref<1x4xf32, #tpu.memory_space<vmem>>, vector<1x4xf32>
      %cst_11 = arith.constant 3.906250e-03 : f32
      %12 = vector.broadcast %cst_11 : f32 to vector<1x4xf32>
      %13 = arith.mulf %11, %12 : vector<1x4xf32>
      %c0_12 = arith.constant 0 : index
      %c0_13 = arith.constant 0 : index
      %14 = vector.load %arg3[%c0_12, %c0_13] : memref<4x1xf32, #tpu.memory_space<vmem>>, vector<4x1xf32>
      %cst_14 = arith.constant dense<0.000000e+00> : vector<1x1xf32>
      %15 = tpu.matmul %13, %14, %cst_14 {dimension_numbers = #tpu.dot_dimension_numbers<[1], [0], [0], [1], [0, 0, 1, 1], [], []>} : vector<1x4xf32>, vector<4x1xf32>, vector<1x1xf32> -> vector<1x1xf32>
      %c0_15 = arith.constant 0 : index
      %c0_16 = arith.constant 0 : index
      %16 = vector.load %arg4[%c0_15, %c0_16] : memref<1x1xf32, #tpu.memory_space<vmem>>, vector<1x1xf32>
      %17 = arith.addf %15, %16 : vector<1x1xf32>
      %cst_17 = arith.constant 0.000000e+00 : f32
      %18 = vector.broadcast %cst_17 : f32 to vector<1x1xf32>
      %19 = arith.maximumf %17, %18 : vector<1x1xf32>
      %c0_18 = arith.constant 0 : index
      %c0_19 = arith.constant 0 : index
      %20 = vector.load %arg5[%c0_18, %c0_19] : memref<1x4xf32, #tpu.memory_space<vmem>>, vector<1x4xf32>
      %cst_20 = arith.constant dense<0.000000e+00> : vector<1x4xf32>
      %21 = tpu.matmul %19, %20, %cst_20 {dimension_numbers = #tpu.dot_dimension_numbers<[1], [0], [0], [1], [0, 0, 1, 1], [], []>} : vector<1x1xf32>, vector<1x4xf32>, vector<1x4xf32> -> vector<1x4xf32>
      %c0_21 = arith.constant 0 : index
      %c0_22 = arith.constant 0 : index
      %22 = vector.load %arg6[%c0_21, %c0_22] : memref<1x4xf32, #tpu.memory_space<vmem>>, vector<1x4xf32>
      %23 = arith.addf %21, %22 : vector<1x4xf32>
      %cst_23 = arith.constant 0.000000e+00 : f32
      %24 = vector.broadcast %cst_23 : f32 to vector<1x4xf32>
      %25 = arith.subf %24, %23 : vector<1x4xf32>
      %26 = math.exp %25 : vector<1x4xf32>
      %cst_24 = arith.constant 1.000000e+00 : f32
      %27 = vector.broadcast %cst_24 : f32 to vector<1x4xf32>
      %28 = arith.addf %27, %26 : vector<1x4xf32>
      %cst_25 = arith.constant 1.000000e+00 : f32
      %29 = vector.broadcast %cst_25 : f32 to vector<1x4xf32>
      %30 = arith.divf %29, %28 : vector<1x4xf32>
      %31 = vector.shape_cast %30 : vector<1x4xf32> to vector<1x1x4xf32>
      %c0_26 = arith.constant 0 : index
      %c0_27 = arith.constant 0 : index
      %c0_28 = arith.constant 0 : index
      %32 = vector.load %arg7[%c0_26, %c0_27, %c0_28] : memref<1x1x4xf32, #tpu.memory_space<vmem>>, vector<1x1x4xf32>
      tpu.vector_store %arg7[%c0_26, %c0_27, %c0_28], %31 {strides = array<i32>} : memref<1x1x4xf32, #tpu.memory_space<vmem>>, vector<1x1x4xf32>,
      %33 = vector.shape_cast %30 : vector<1x4xf32> to vector<1x1x4xf32>
      %cst_29 = arith.constant dense<0.000000e+00> : vector<1xf32>
      %34 = vector.multi_reduction <add>, %33, %cst_29 [1, 2] : vector<1x1x4xf32> to vector<1xf32>
      %35 = vector.shape_cast %34 : vector<1xf32> to vector<1x1x1xf32>
      %36 = vector.extract %35[0, 0, 0] : f32 from vector<1x1x1xf32>
      %37 = vector.broadcast %36 : f32 to vector<1x1xf32>
      %38 = vector.shape_cast %37 : vector<1x1xf32> to vector<1x1x1xf32>
      %c0_30 = arith.constant 0 : index
      %c0_31 = arith.constant 0 : index
      %c0_32 = arith.constant 0 : index
      %39 = vector.load %arg8[%c0_30, %c0_31, %c0_32] : memref<1x1x1xf32, #tpu.memory_space<vmem>>, vector<1x1x1xf32>
      tpu.vector_store %arg8[%c0_30, %c0_31, %c0_32], %38 {strides = array<i32>} : memref<1x1x1xf32, #tpu.memory_space<vmem>>, vector<1x1x1xf32>,
    } else {
    }
    return
  }
  func.func @transform_0(%arg0: i32, %arg1: i32) -> (i32, i32, i32) {
    %c0_i32 = arith.constant 0 : i32
    %c0_i32_0 = arith.constant 0 : i32
    return %arg0, %c0_i32, %arg1 : i32, i32, i32
  }
  func.func @transform_1(%arg0: i32, %arg1: i32) -> (i32, i32) {
    %c0_i32 = arith.constant 0 : i32
    %c0_i32_0 = arith.constant 0 : i32
    %c0_i32_1 = arith.constant 0 : i32
    return %c0_i32, %c0_i32_0 : i32, i32
  }
  func.func @transform_2(%arg0: i32, %arg1: i32) -> (i32, i32) {
    %c0_i32 = arith.constant 0 : i32
    %c0_i32_0 = arith.constant 0 : i32
    %c0_i32_1 = arith.constant 0 : i32
    return %c0_i32, %c0_i32_0 : i32, i32
  }
  func.func @transform_3(%arg0: i32, %arg1: i32) -> (i32, i32) {
    %c0_i32 = arith.constant 0 : i32
    %c0_i32_0 = arith.constant 0 : i32
    %c0_i32_1 = arith.constant 0 : i32
    return %c0_i32, %c0_i32_0 : i32, i32
  }
  func.func @transform_4(%arg0: i32, %arg1: i32) -> (i32, i32) {
    %c0_i32 = arith.constant 0 : i32
    %c0_i32_0 = arith.constant 0 : i32
    %c0_i32_1 = arith.constant 0 : i32
    return %c0_i32, %c0_i32_0 : i32, i32
  }
  func.func @transform_5(%arg0: i32, %arg1: i32) -> (i32, i32, i32) {
    %c0_i32 = arith.constant 0 : i32
    %c0_i32_0 = arith.constant 0 : i32
    %c0_i32_1 = arith.constant 0 : i32
    return %arg0, %c0_i32, %c0_i32_0 : i32, i32, i32
  }
  func.func @transform_6(%arg0: i32, %arg1: i32) -> (i32, i32, i32) {
    %c0_i32 = arith.constant 0 : i32
    %c0_i32_0 = arith.constant 0 : i32
    %c0_i32_1 = arith.constant 0 : i32
    return %arg0, %c0_i32, %c0_i32_0 : i32, i32, i32
  }
}

</mosaic_0001>

<llo_original>
// kernel: tpu_custom_call.1
$region0: #{tpu_custom_call.1}
  #allocation0 [shape = 'u32[]', space=smem, size = 0x4, offset = 0x4, fixed_abs, tag = 'smem constant byte address 0x4 - core index']
  #allocation1 [shape = 'u32[72,128]{1,0:T(1,128)}', space=vmem, size = 0x9000, scoped, tag = 'internal scratch']
  #allocation2 [shape = 'f32[1,4]{1,0:T(1,128)}', space=vmem, size = 0x200, scoped, tag = 'scratch operand']
  #allocation3 [shape = 'f32[1,1]{1,0:T(1,128)S(1)}', space=vmem, size = 0x200, scoped, tag = 'scoped memory for tpu_custom_call.1']
  %s0 = inlined_call_operand.hbm [shape: f32[2,4,256], index: 0, kind: input, shape index: {}]
  %s1 = inlined_call_operand.vmem [shape: f32[4,1], index: 1, kind: input, shape index: {}]
  %s2 = inlined_call_operand.<no memory space> [shape: f32[1,1], index: 2, kind: input, shape index: {}]
  %s3 = inlined_call_operand.vmem [shape: f32[1,4], index: 3, kind: input, shape index: {}]
  %s4 = inlined_call_operand.vmem [shape: f32[1,4], index: 4, kind: input, shape index: {}]
  %s5 = inlined_call_operand.hbm [shape: f32[2,1,4], index: 5, kind: output, shape index: {0}]
  %s6 = inlined_call_operand.vmem [shape: f32[2,1,1], index: 6, kind: output, shape index: {1}]
  %7 = xla_tuple %s5, %s6
  %s8 = sld [smem:[#allocation0]]
  $region73: #{tpu_custom_call.1} parent=0
    _
  %s10 = ssub.s32 1, %s8
  %s11 = scalar_select 0, %s10, %s8
  %v12 = vstv %s2
  %13 = vst [vmem:[#allocation3] sm:$0x1] %v12
  $region1: #{tpu_custom_call.1} parent=0
    #allocation4 [shape = 'u8[8192]{0}', space=vmem, size = 0x2000, scoped, tag = 'input window, operand 0']
    #allocation5 [shape = 's32[2]{0}', space=sflag, size = 0x8, scoped, tag = 'scoped memory for tpu_custom_call.1']
    #allocation6 [shape = 's32[2]{0}', space=sflag, size = 0x8, scoped, tag = 'scoped memory for tpu_custom_call.1']
    #allocation7 [shape = 'u8[1024]{0}', space=vmem, size = 0x400, scoped, tag = 'output window, operand 0']
    %14 = vsyncpa [#allocation5], 0
    %s15 = scalar_lea.sflag [#allocation5], 1
    %16 = vsyncpa %s15, 0
    %17 = vsyncpa [#allocation6], 0
    %s18 = scalar_lea.sflag [#allocation6], 1
    %19 = vsyncpa %s18, 0
    loop: start=0, step=1, limit=4
    $region2: #{tpu_custom_call.1} parent=1 // loop_pre_header
      _
    $region3: #{tpu_custom_call.1} parent=1 // loop_header
      %s21 = sphi 0, %s25
      %p22 = scmp.ge.s32.totalorder %s21, 4
      %s28 = sphi 0, %s40
      %s29 = sphi 0, %s36
      %s30 = sphi 0, %s28
      %s31 = sphi 0, %s29
      %s32 = sphi 0, %s30
      %s33 = sphi 0, %s31
      %s45 = sphi 0, %s47
      %s48 = sphi 0, %s45
      %s49 = sphi 0, %s48
      %s65 = sphi 0, %s49
      %s69 = sphi 0, %s69
      %s71 = sphi 0, %s69
      %s72 = sphi 0, %s71
      %s86 = sphi 0, %s72
      %s90 = sphi 0, %s90
      %s92 = sphi 0, %s90
      %s93 = sphi 0, %s92
      %s107 = sphi 0, %s93
      %s111 = sphi 0, %s111
      %s113 = sphi 0, %s111
      %s114 = sphi 0, %s113
      %s128 = sphi 0, %s114
      %s132 = sphi 0, %s132
      %s134 = sphi 0, %s132
      %s135 = sphi 0, %s134
      %s149 = sphi 0, %s135
      %s155 = sphi 0, %s157
      %s158 = sphi 0, %s155
      %s159 = sphi 0, %s158
      %s175 = sphi 0, %s159
      %s181 = sphi 0, %s183
      %s184 = sphi 0, %s181
      %s185 = sphi 0, %s184
      %s201 = sphi 0, %s185
    $region4: #{tpu_custom_call.1} parent=1 // loop_header_branch
      %24 = sbr.rel (%p22) target = $region8
    $region5: #{tpu_custom_call.1} parent=1 // loop_body
      %s26 = ssub.s32 %s21, 1
      %s27 = ssub.s32 %s21, 2
      %s34 = sadd.s32 1, %s29
      %p35 = scmp.ge.s32.totalorder %s34, 1
      %s36 = scalar_select %p35, 0, %s34
      %s37 = sadd.s32 1, %s28
      %s38 = scalar_select %p35, %s37, %s28
      %p39 = scmp.ge.s32.totalorder %s38, 2
      %s40 = scalar_select %p39, 0, %s38
      %s41 = ssub.s32 %s28, %s40
      %s42 = ssub.s32 %s29, %s36
      %s43 = sor.u32 %s41, %s42
      %p44 = scmp.eq.s32.totalorder %s43, 0
      %s46 = sadd.s32 %s45, 1
      %s47 = scalar_select %p44, %s45, %s46
      %p50 = pneg %p44
      %p51 = scmp.eq.s32.totalorder %s21, 1
      %p52 = por %p50, %p51
      %p53 = scmp.ne.s32.totalorder %s45, %s48
      %p54 = scmp.eq.s32.totalorder %s21, 0
      %p55 = por %p53, %p54
      %p56 = scmp.ne.s32.totalorder %s45, %s48
      %p57 = scmp.eq.s32.totalorder %s26, 1
      %p58 = por %p56, %p57
      %p59 = scmp.ne.s32.totalorder %s48, %s49
      %p60 = scmp.eq.s32.totalorder %s26, 0
      %p61 = por %p59, %p60
      %p62 = scmp.ne.s32.totalorder %s48, %s49
      %p63 = scmp.eq.s32.totalorder %s27, 1
      %p64 = por %p62, %p63
      %p66 = scmp.ne.s32.totalorder %s49, %s65
      %p67 = scmp.eq.s32.totalorder %s27, 0
      %p68 = por %p66, %p67
      %s70 = sadd.s32 %s69, 1
      %p73 = scmp.eq.s32.totalorder %s21, 1
      %p74 = scmp.ne.s32.totalorder %s69, %s71
      %p75 = scmp.eq.s32.totalorder %s21, 0
      %p76 = por %p74, %p75
      %p77 = scmp.ne.s32.totalorder %s69, %s71
      %p78 = scmp.eq.s32.totalorder %s26, 1
      %p79 = por %p77, %p78
      %p80 = scmp.ne.s32.totalorder %s71, %s72
      %p81 = scmp.eq.s32.totalorder %s26, 0
      %p82 = por %p80, %p81
      %p83 = scmp.ne.s32.totalorder %s71, %s72
      %p84 = scmp.eq.s32.totalorder %s27, 1
      %p85 = por %p83, %p84
      %p87 = scmp.ne.s32.totalorder %s72, %s86
      %p88 = scmp.eq.s32.totalorder %s27, 0
      %p89 = por %p87, %p88
      %s91 = sadd.s32 %s90, 1
      %p94 = scmp.eq.s32.totalorder %s21, 1
      %p95 = scmp.ne.s32.totalorder %s90, %s92
      %p96 = scmp.eq.s32.totalorder %s21, 0
      %p97 = por %p95, %p96
      %p98 = scmp.ne.s32.totalorder %s90, %s92
      %p99 = scmp.eq.s32.totalorder %s26, 1
      %p100 = por %p98, %p99
      %p101 = scmp.ne.s32.totalorder %s92, %s93
      %p102 = scmp.eq.s32.totalorder %s26, 0
      %p103 = por %p101, %p102
      %p104 = scmp.ne.s32.totalorder %s92, %s93
      %p105 = scmp.eq.s32.totalorder %s27, 1
      %p106 = por %p104, %p105
      %p108 = scmp.ne.s32.totalorder %s93, %s107
      %p109 = scmp.eq.s32.totalorder %s27, 0
      %p110 = por %p108, %p109
      %s112 = sadd.s32 %s111, 1
      %p115 = scmp.eq.s32.totalorder %s21, 1
      %p116 = scmp.ne.s32.totalorder %s111, %s113
      %p117 = scmp.eq.s32.totalorder %s21, 0
      %p118 = por %p116, %p117
      %p119 = scmp.ne.s32.totalorder %s111, %s113
      %p120 = scmp.eq.s32.totalorder %s26, 1
      %p121 = por %p119, %p120
      %p122 = scmp.ne.s32.totalorder %s113, %s114
      %p123 = scmp.eq.s32.totalorder %s26, 0
      %p124 = por %p122, %p123
      %p125 = scmp.ne.s32.totalorder %s113, %s114
      %p126 = scmp.eq.s32.totalorder %s27, 1
      %p127 = por %p125, %p126
      %p129 = scmp.ne.s32.totalorder %s114, %s128
      %p130 = scmp.eq.s32.totalorder %s27, 0
      %p131 = por %p129, %p130
      %s133 = sadd.s32 %s132, 1
      %p136 = scmp.eq.s32.totalorder %s21, 1
      %p137 = scmp.ne.s32.totalorder %s132, %s134
      %p138 = scmp.eq.s32.totalorder %s21, 0
      %p139 = por %p137, %p138
      %p140 = scmp.ne.s32.totalorder %s132, %s134
      %p141 = scmp.eq.s32.totalorder %s26, 1
      %p142 = por %p140, %p141
      %p143 = scmp.ne.s32.totalorder %s134, %s135
      %p144 = scmp.eq.s32.totalorder %s26, 0
      %p145 = por %p143, %p144
      %p146 = scmp.ne.s32.totalorder %s134, %s135
      %p147 = scmp.eq.s32.totalorder %s27, 1
      %p148 = por %p146, %p147
      %p150 = scmp.ne.s32.totalorder %s135, %s149
      %p151 = scmp.eq.s32.totalorder %s27, 0
      %p152 = por %p150, %p151
      %s153 = ssub.s32 %s28, %s40
      %p154 = scmp.eq.s32.totalorder %s153, 0
      %s156 = sadd.s32 %s155, 1
      %s157 = scalar_select %p154, %s155, %s156
      %p160 = pneg %p154
      %p161 = scmp.eq.s32.totalorder %s21, 1
      %p162 = por %p160, %p161
      %p163 = scmp.ne.s32.totalorder %s155, %s158
      %p164 = scmp.eq.s32.totalorder %s21, 0
      %p165 = por %p163, %p164
      %p166 = scmp.ne.s32.totalorder %s155, %s158
      %p167 = scmp.eq.s32.totalorder %s26, 1
      %p168 = por %p166, %p167
      %p169 = scmp.ne.s32.totalorder %s158, %s159
      %p170 = scmp.eq.s32.totalorder %s26, 0
      %p171 = por %p169, %p170
      %p172 = scmp.ne.s32.totalorder %s158, %s159
      %p173 = scmp.eq.s32.totalorder %s27, 1
      %p174 = por %p172, %p173
      %p176 = scmp.ne.s32.totalorder %s159, %s175
      %p177 = scmp.eq.s32.totalorder %s27, 0
      %p178 = por %p176, %p177
      %s179 = ssub.s32 %s28, %s40
      %p180 = scmp.eq.s32.totalorder %s179, 0
      %s182 = sadd.s32 %s181, 1
      %s183 = scalar_select %p180, %s181, %s182
      %p186 = pneg %p180
      %p187 = scmp.eq.s32.totalorder %s21, 1
      %p188 = por %p186, %p187
      %p189 = scmp.ne.s32.totalorder %s181, %s184
      %p190 = scmp.eq.s32.totalorder %s21, 0
      %p191 = por %p189, %p190
      %p192 = scmp.ne.s32.totalorder %s181, %s184
      %p193 = scmp.eq.s32.totalorder %s26, 1
      %p194 = por %p192, %p193
      %p195 = scmp.ne.s32.totalorder %s184, %s185
      %p196 = scmp.eq.s32.totalorder %s26, 0
      %p197 = por %p195, %p196
      %p198 = scmp.ne.s32.totalorder %s184, %s185
      %p199 = scmp.eq.s32.totalorder %s27, 1
      %p200 = por %p198, %p199
      %p202 = scmp.ne.s32.totalorder %s185, %s201
      %p203 = scmp.eq.s32.totalorder %s27, 0
      %p204 = por %p202, %p203
      %p205 = scmp.le.s32.totalorder 1, %s21
      %p206 = scmp.lt.s32.totalorder %s21, 3
      %p207 = pnand %p205, %p206
      %p208 = pneg %p207
      // Predicated region
      $region9: #{tpu_custom_call.1} parent=5 // pred_check
        _
      $region10: #{tpu_custom_call.1} parent=5 // pred_check_branch
        %210 = sbr.rel (%p207) target = $region12
      $region11: #{tpu_custom_call.1} parent=5 // pred_region
        %s211 = ssub.s32 %s21, 1
        // Predicated region
        $region13: #{tpu_custom_call.1} parent=11 // pred_check
          %p212 = pneg %p82
        $region14: #{tpu_custom_call.1} parent=11 // pred_check_branch
          %214 = sbr.rel (%p212) target = $region16
        $region15: #{tpu_custom_call.1} parent=11 // pred_region
          _
        $region16: #{tpu_custom_call.1} parent=11 // pred_fallthru
          _
        // Predicated region
        $region17: #{tpu_custom_call.1} parent=11 // pred_check
          %p215 = pneg %p103
        $region18: #{tpu_custom_call.1} parent=11 // pred_check_branch
          %217 = sbr.rel (%p215) target = $region20
        $region19: #{tpu_custom_call.1} parent=11 // pred_region
          _
        $region20: #{tpu_custom_call.1} parent=11 // pred_fallthru
          _
        // Predicated region
        $region21: #{tpu_custom_call.1} parent=11 // pred_check
          %p218 = pneg %p124
        $region22: #{tpu_custom_call.1} parent=11 // pred_check_branch
          %220 = sbr.rel (%p218) target = $region24
        $region23: #{tpu_custom_call.1} parent=11 // pred_region
          _
        $region24: #{tpu_custom_call.1} parent=11 // pred_fallthru
          _
        // Predicated region
        $region25: #{tpu_custom_call.1} parent=11 // pred_check
          %p221 = pneg %p145
        $region26: #{tpu_custom_call.1} parent=11 // pred_check_branch
          %223 = sbr.rel (%p221) target = $region28
        $region27: #{tpu_custom_call.1} parent=11 // pred_region
          _
        $region28: #{tpu_custom_call.1} parent=11 // pred_fallthru
          _
      $region12: #{tpu_custom_call.1} parent=5 // pred_fallthru
        _
      %p224 = scmp.lt.s32.totalorder %s21, 2
      // Predicated region
      $region29: #{tpu_custom_call.1} parent=5 // pred_check
        %p225 = pneg %p224
      $region30: #{tpu_custom_call.1} parent=5 // pred_check_branch
        %227 = sbr.rel (%p225) target = $region32
      $region31: #{tpu_custom_call.1} parent=5 // pred_region
        // Predicated region
        $region33: #{tpu_custom_call.1} parent=31 // pred_check
          %p228 = pneg %p55
        $region34: #{tpu_custom_call.1} parent=31 // pred_check_branch
          %230 = sbr.rel (%p228) target = $region36
        $region35: #{tpu_custom_call.1} parent=31 // pred_region
          %s231 = sand.u32 %s45, 1
          %s232 = scalar_lea.sflag [#allocation5], %s231
          %s233 = sand.u32 %s45, 1
          %s234 = smul.addr %s233, 8
          %s235 = scalar_lea.vmem [#allocation4], %s234
          %s236 = smul.u32 2, %s29
          %238 = vsyncadd %s232, 0
          %s239 = smul.addr %s28, 2
          %s240 = sadd.s32 %s236, %s239
          %s241 = smul.addr %s240, 4
          %s242 = scalar_lea.hbm %s0, %s241
          %s244 = sshll.u32 %s242, 4
          %s245 = int_to_ptr.hbm [resolvable:$true] %s244
          %s246 = sshll.u32 %s235, 4
          %s247 = int_to_ptr.vmem [resolvable:$true] %s246
          %249 = dma.hbm_to_vmem [thread:$0]  %s245, 128, %s247, %s232
        $region36: #{tpu_custom_call.1} parent=31 // pred_fallthru
          _
      $region32: #{tpu_custom_call.1} parent=5 // pred_fallthru
        _
      %p250 = scmp.le.s32.totalorder 1, %s21
      %p251 = scmp.lt.s32.totalorder %s21, 3
      %p252 = pnand %p250, %p251
      %p253 = pneg %p252
      // Predicated region
      $region37: #{tpu_custom_call.1} parent=5 // pred_check
        _
      $region38: #{tpu_custom_call.1} parent=5 // pred_check_branch
        %255 = sbr.rel (%p252) target = $region40
      $region39: #{tpu_custom_call.1} parent=5 // pred_region
        %s256 = ssub.s32 %s21, 1
        %s257 = sand.u32 %s48, 1
        %s258 = scalar_lea.sflag [#allocation5], %s257
        %s259 = sand.u32 %s48, 1
        %s260 = smul.addr %s259, 8
        %s261 = scalar_lea.vmem [#allocation4], %s260
        // Predicated region
        $region41: #{tpu_custom_call.1} parent=39 // pred_check
          %p262 = pneg %p61
        $region42: #{tpu_custom_call.1} parent=39 // pred_check_branch
          %264 = sbr.rel (%p262) target = $region44
        $region43: #{tpu_custom_call.1} parent=39 // pred_region
          %266 = dma.done %s258, 128
        $region44: #{tpu_custom_call.1} parent=39 // pred_fallthru
          _
        %s267 = sand.u32 %s48, 1
        %s268 = scalar_lea.sflag [#allocation5], %s267
        %s269 = sand.u32 %s48, 1
        %s270 = smul.addr %s269, 8
        %s271 = scalar_lea.vmem [#allocation4], %s270
        %p272 = pneg %p61
        %p273 = pneg %p58
        %p274 = pneg %p82
        %p275 = pneg %p79
        %p276 = pneg %p103
        %p277 = pneg %p100
        %p278 = pneg %p124
        %p279 = pneg %p121
        %p280 = pneg %p145
        %p281 = pneg %p142
        %p282 = pneg %p171
        %p283 = pneg %p168
        %s284 = sand.u32 %s158, 1
        %s285 = scalar_lea.sflag [#allocation6], %s284
        %s286 = sand.u32 %s158, 1
        %s287 = scalar_lea.vmem [#allocation7], %s286
        %p288 = pneg %p197
        %p289 = pneg %p194
        %p290 = scmp.lt.s32.totalorder %s30, 1
        %s291 = scalar_select %p290, %s30, 1
        %s292 = scalar_lea.vmem %s6, %s291
        %s293 = smul.u32 2, %s31
        %p294 = scmp.lt.s32.totalorder %s30, 1
        %s295 = scalar_select %p294, %s30, 1
        %s296 = scalar_lea.vmem %s6, %s295
        %p297 = scmp.eq.s32.totalorder %s31, 0
        // Predicated region
        $region45: #{tpu_custom_call.1} parent=39 // pred_check
          %p298 = pneg %p297
        $region46: #{tpu_custom_call.1} parent=39 // pred_check_branch
          %300 = sbr.rel (%p298) target = $region48
        $region47: #{tpu_custom_call.1} parent=39 // pred_region
          %vm301 = vcmask 24576
          %302 = vst.msk [vmem:[#allocation2] sm:$0x1] %vm301, 0.0
        $region48: #{tpu_custom_call.1} parent=39 // pred_fallthru
          _
        %v303 = vld [vmem:[%s261] sm:$0xff]
        %v304 = vld [vmem:[#allocation2] sm:$0x1]
        %306 = vst [vmem:[#allocation1] ss:$2 sm:$0xff] %v303
        %v307 = vld.sshfl [vmem:[#allocation1] sm:$0xff pattern:$0x75316420]
        %v308 = vld.sshfl [vmem:[#allocation1 + $0x8] sm:$0xff pattern:$0x75316420]
        %vm311 = vcmask 1043456
        %v312 = vsel %vm311, %v307, 0.0
        %v313 = vsel %vm311, %v308, 0.0
        %v314 = vadd.f32 %v312, %v313
        %315 = vadd.xlane.f32.xlu0 %v314
        %v316 = vpop.xlane.xlu0 %315
        %v318 = vperm.slane %v316, 0
        %v319 = vperm.slane %v316, 1
        %v320 = vperm.slane %v316, 2
        %v321 = vperm.slane %v316, 3
        %322 = vst [vmem:[#allocation1] ss:$9 sm:$0xff] %v318
        %s323 = scalar_lea.vmem [#allocation1], 1
        %324 = vst [vmem:[%s323] ss:$9 sm:$0xff] %v319
        %s325 = scalar_lea.vmem [#allocation1], 2
        %326 = vst [vmem:[%s325] ss:$9 sm:$0xff] %v320
        %s327 = scalar_lea.vmem [#allocation1], 3
        %328 = vst [vmem:[%s327] ss:$9 sm:$0xff] %v321
        %v329 = vld [vmem:[#allocation1] sm:$0xff]
        %330 = vset.pattern.permute.xlu0 0
        %331 = vperm.xlu0 %330, %v329
        %v332 = vpop.permute.xlu0 %331
        %v333 = vlaneseq
        %v334 = vand.u32 %v333, 127
        %v335 = vperm.slane %v332, %v334
        %v337 = vadd.f32 %v304, %v335
        %vm338 = vcmask 24576
        %339 = vst.msk [vmem:[#allocation2] sm:$0x1] %vm338, %v337
        // Predicated region
        $region49: #{tpu_custom_call.1} parent=39 // pred_check
          %p340 = pneg %p297
        $region50: #{tpu_custom_call.1} parent=39 // pred_check_branch
          %342 = sbr.rel (%p340) target = $region52
        $region51: #{tpu_custom_call.1} parent=39 // pred_region
          %v343 = vld [vmem:[#allocation2] sm:$0x1]
          %v344 = vmul.f32 %v343, 0.00390625
          %v345 = vld [vmem:[%s1] sm:$0xf]
          %v346 = vld [vmem:[#allocation3] sm:$0x1]
          %vm347 = vcmask 31744
          %v349 = vsel %vm347, %v344, 0
          %v352 = vsel %vm311, %v345, 0
          %354 = vmatpush.msra.mxu0 0.0
          %355 = vmatpush.msra.mxu0 0.0
          %356 = vmatpush.msra.mxu0 0.0
          %357 = vmatpush.msra.mxu0 0.0
          %358 = vmatpush.msra.mxu0 0.0
          %359 = vmatpush.msra.mxu0 0.0
          %360 = vmatpush.msra.mxu0 0.0
          %361 = vmatpush.msra.mxu0 0.0
          %362 = vmatpush.msra.mxu0 0.0
          %363 = vmatpush.msra.mxu0 0.0
          %364 = vmatpush.msra.mxu0 0.0
          %365 = vmatpush.msra.mxu0 0.0
          %366 = vmatpush.msra.mxu0 0.0
          %367 = vmatpush.msra.mxu0 0.0
          %368 = vmatpush.msra.mxu0 0.0
          %369 = vmatpush.msra.mxu0 %v352
          %370 = vmatmul.f32.gmra.mxu0 %v349
          %v371 = vpop.f32.mrf.mxu0
          %v372 = vadd.f32 %v346, %v371
          %373 = vdwg.mxu0
          %v374 = vmax.f32 %v372, 0.0
          %v375 = vld [vmem:[%s3] sm:$0x1]
          %v376 = vld [vmem:[%s4] sm:$0x1]
          %vm377 = vcmask 7168
          %v379 = vsel %vm377, %v374, 0
          %vm381 = vcmask 1040384
          %v383 = vsel %vm381, %v375, 0
          %385 = vmatpush.msra.mxu0 0.0
          %386 = vmatpush.msra.mxu0 0.0
          %387 = vmatpush.msra.mxu0 0.0
          %388 = vmatpush.msra.mxu0 0.0
          %389 = vmatpush.msra.mxu0 0.0
          %390 = vmatpush.msra.mxu0 0.0
          %391 = vmatpush.msra.mxu0 0.0
          %392 = vmatpush.msra.mxu0 0.0
          %393 = vmatpush.msra.mxu0 0.0
          %394 = vmatpush.msra.mxu0 0.0
          %395 = vmatpush.msra.mxu0 0.0
          %396 = vmatpush.msra.mxu0 0.0
          %397 = vmatpush.msra.mxu0 0.0
          %398 = vmatpush.msra.mxu0 0.0
          %399 = vmatpush.msra.mxu0 0.0
          %400 = vmatpush.msra.mxu0 %v383
          %401 = vmatmul.f32.gmra.mxu0 %v379
          %v402 = vpop.f32.mrf.mxu0
          %v403 = vadd.f32 %v376, %v402
          %404 = vdwg.mxu0
          %v405 = vsub.f32 0.0, %v403
          %v406 = vmul.f32 %v405, 1.442695
          %v407 = vpow.pop %v406
          %v408 = vadd.f32 %v407, 1.0
          %v409 = vrcp.pop %v408
          %v410 = vmul.f32 %v408, %v409
          %v411 = vsub.f32 1.0, %v410
          %v412 = vmul.f32 %v409, %v411
          %v413 = vadd.f32 %v409, %v412
          %vm414 = vweird.f32 %v408
          %vm415 = vweird.f32 %v409
          %vm416 = vmor %vm414, %vm415
          %v417 = vsel %vm416, %v409, %v413
          %v418 = vand.u32 2147483647, %v408
          %vm419 = vcmp.eq.f32.partialorder %v418, 8.507059e+37
          %v420 = vand.u32 %v408, 2147483648
          %v421 = vor.u32 1.1754944e-38, %v420
          %v422 = vsel %vm419, %v421, %v417
          %v423 = vmul.f32 1.0, %v422
          %424 = vst.msk [vmem:[%s287] sm:$0x1] %vm338, %v423
          %v425 = vsel %vm338, %v423, 0.0
          %426 = vadd.xlane.f32.xlu0 %v425
          %v427 = vpop.xlane.xlu0 %426
          %v428 = vrot.slane %v427, 4
          %v429 = vadd.f32 %v427, %v428
          %v430 = vrot.slane %v429, 2
          %v431 = vadd.f32 %v429, %v430
          %v432 = vrot.slane %v431, 1
          %v433 = vadd.f32 %v431, %v432
          %s434 = vtos %v433
          %v435 = vstv %s434
          %vm436 = vcmask 0
          %437 = vst.msk [vmem:[%s296] sm:$0x1] %vm436, %v435
        $region52: #{tpu_custom_call.1} parent=39 // pred_fallthru
          _
        %s438 = sand.u32 %s158, 1
        %s439 = scalar_lea.sflag [#allocation6], %s438
        %s440 = sand.u32 %s158, 1
        %s441 = scalar_lea.vmem [#allocation7], %s440
        %p442 = scmp.lt.s32.totalorder %s30, 1
        %s443 = scalar_select %p442, %s30, 1
        %s444 = scalar_lea.vmem %s6, %s443
        // Predicated region
        $region53: #{tpu_custom_call.1} parent=39 // pred_check
          %p445 = pneg %p168
        $region54: #{tpu_custom_call.1} parent=39 // pred_check_branch
          %447 = sbr.rel (%p445) target = $region56
        $region55: #{tpu_custom_call.1} parent=39 // pred_region
          %449 = vsyncadd %s439, 0
          %s450 = scalar_lea.hbm %s5, %s30
          %s452 = sshll.u32 %s441, 4
          %s453 = int_to_ptr.vmem [resolvable:$true] %s452
          %s454 = sshll.u32 %s450, 4
          %s455 = int_to_ptr.hbm [resolvable:$true] %s454
          %457 = dma.vmem_to_hbm [thread:$0]  %s453, 16, %s455, %s439
        $region56: #{tpu_custom_call.1} parent=39 // pred_fallthru
          _
        // Predicated region
        $region57: #{tpu_custom_call.1} parent=39 // pred_check
          %p458 = pneg %p194
        $region58: #{tpu_custom_call.1} parent=39 // pred_check_branch
          %460 = sbr.rel (%p458) target = $region60
        $region59: #{tpu_custom_call.1} parent=39 // pred_region
          _
        $region60: #{tpu_custom_call.1} parent=39 // pred_fallthru
          _
      $region40: #{tpu_custom_call.1} parent=5 // pred_fallthru
        _
      %p461 = scmp.le.s32.totalorder 2, %s21
      // Predicated region
      $region61: #{tpu_custom_call.1} parent=5 // pred_check
        %p462 = pneg %p461
      $region62: #{tpu_custom_call.1} parent=5 // pred_check_branch
        %464 = sbr.rel (%p462) target = $region64
      $region63: #{tpu_custom_call.1} parent=5 // pred_region
        %s465 = ssub.s32 %s21, 2
        // Predicated region
        $region65: #{tpu_custom_call.1} parent=63 // pred_check
          %p466 = pneg %p174
        $region66: #{tpu_custom_call.1} parent=63 // pred_check_branch
          %468 = sbr.rel (%p466) target = $region68
        $region67: #{tpu_custom_call.1} parent=63 // pred_region
          %s469 = sand.u32 %s159, 1
          %s470 = scalar_lea.sflag [#allocation6], %s469
          %s471 = sand.u32 %s159, 1
          %s472 = scalar_lea.vmem [#allocation7], %s471
          %474 = dma.done %s470, 16
        $region68: #{tpu_custom_call.1} parent=63 // pred_fallthru
          _
        // Predicated region
        $region69: #{tpu_custom_call.1} parent=63 // pred_check
          %p475 = pneg %p200
        $region70: #{tpu_custom_call.1} parent=63 // pred_check_branch
          %477 = sbr.rel (%p475) target = $region72
        $region71: #{tpu_custom_call.1} parent=63 // pred_region
          %p478 = scmp.lt.s32.totalorder %s32, 1
          %s479 = scalar_select %p478, %s32, 1
          %s480 = scalar_lea.vmem %s6, %s479
        $region72: #{tpu_custom_call.1} parent=63 // pred_fallthru
          _
      $region64: #{tpu_custom_call.1} parent=5 // pred_fallthru
        _
    $region6: #{tpu_custom_call.1} parent=1 // loop_footer
      %s25 = sadd.s32 1, %s21
    $region7: #{tpu_custom_call.1} parent=1 // loop_footer_branch
      %20 = sbr.rel target = $region3
    $region8: #{tpu_custom_call.1} parent=1 // loop_exit
      _
    %481 = vsyncpa [#allocation5], 1
    %s482 = scalar_lea.sflag [#allocation5], 1
    %483 = vsyncpa %s482, 1
    %484 = vsyncpa [#allocation6], 1
    %s485 = scalar_lea.sflag [#allocation6], 1
    %486 = vsyncpa %s485, 1

</llo_original>
